<compile_context>
chip_gen: v7x
topology: tpu7x:2x2x1
jax: 0.10.0
libtpu: 0.0.40
codegen_flags: <defaults>
</compile_context>

<pallas_src>
import functools
import math

import jax
import jax.numpy as jnp
from jax.experimental import pallas as pl
from jax.experimental.pallas import tpu as pltpu

_LANE = 128
_SUBLANE = 8


def _round_up(x, m):
    return ((x + m - 1) // m) * m


# ----------------------------------------------------------------------------
# Fused kernel: one batch tile through every layer, activation stays on-chip.
# ----------------------------------------------------------------------------
def _mlp_fused_kernel(x_ref, *refs, n_layers, compute_dtype):
    # refs = (w_0, b_0, ..., w_{L-1}, b_{L-1}, out_ref, feat_ref)
    # x_ref : (tile_b, input_dim)       original dtype (cast happens here)
    # w_i   : (din_pad_i, dout_pad_i)   compute_dtype (lane-padded, exact zeros)
    # b_i   : (1, dout_pad_i)           f32
    param_refs = refs[: 2 * n_layers]
    out_ref = refs[2 * n_layers]
    feat_ref = refs[2 * n_layers + 1]

    x = x_ref[...]                       # original dtype
    h = x.astype(compute_dtype)

    # Hidden layers: y = relu(x @ W + b); f32 MXU accumulation, f32 epilogue,
    # activation carried between layers in compute_dtype (one cast per layer).
    for i in range(n_layers - 1):
        w = param_refs[2 * i][...]
        b = param_refs[2 * i + 1][...]
        acc = jnp.dot(h, w, preferred_element_type=jnp.float32)
        h = jnp.maximum(acc + b, 0.0).astype(compute_dtype)

    # `features` = hidden representation before the last layer.
    # n_layers == 1: features is the reshaped INPUT — take it from the
    # untouched original-dtype tile so bf16 compute does not round it.
    if n_layers == 1:
        feat = x.astype(feat_ref.dtype)
    else:
        feat = h.astype(feat_ref.dtype)
    if feat.shape[-1] != feat_ref.shape[-1]:  # only the n_layers==1 edge case
        pad = jnp.zeros((feat.shape[0], feat_ref.shape[-1] - feat.shape[-1]),
                        feat_ref.dtype)
        feat = jnp.concatenate([feat, pad], axis=-1)
    feat_ref[...] = feat

    # Final layer (no activation).  Output width is lane-padded to 128 so the
    # store is a full, unmasked lane-dense vst (real columns sliced outside).
    w = param_refs[2 * (n_layers - 1)][...]
    b = param_refs[2 * (n_layers - 1) + 1][...]
    acc = jnp.dot(h, w, preferred_element_type=jnp.float32)
    out_ref[...] = (acc + b).astype(out_ref.dtype)


# ----------------------------------------------------------------------------
# Wrapper: parameter padding, VMEM budgeting, batch grid, single pallas_call.
# ----------------------------------------------------------------------------
def mlp_forward(params, x, input_dim, *, compute_dtype=None, batch_tile=512):
    """Returns (out, features) exactly like the PyTorch module.

    params: list of (W, b) with W already transposed to (din, dout).
    compute_dtype: operand dtype for the MXU (default x.dtype to preserve the
      module's numerics; pass jnp.bfloat16 for the fast path on v6e/v7x).
    """
    n_layers = len(params)
    assert n_layers >= 1, "n_layers should at least be 1"
    B = x.shape[0]
    out_dtype = x.dtype
    if compute_dtype is None:
        compute_dtype = out_dtype

    x2 = x.reshape(B, input_dim)          # metadata-only reshape, no cast/pad
    output_dim = params[-1][0].shape[1]
    feat_dim = params[-2][0].shape[1] if n_layers >= 2 else input_dim

    # ---- pad parameters to lane-dense output widths (multiples of 128) -----
    # Exact math: padded columns have zero weight & bias -> ReLU gives zeros,
    # which hit zero-padded rows of the next weight and contribute 0.
    padded_params = []
    prev_width = input_dim                # width of the live activation
    for (w, b) in params:
        din, dout = w.shape
        dout_pad = _round_up(dout, _LANE)
        w_p = jnp.zeros((prev_width, dout_pad), compute_dtype)
        w_p = w_p.at[:din, :dout].set(w.astype(compute_dtype))
        b_p = jnp.zeros((1, dout_pad), jnp.float32)
        b_p = b_p.at[:, :dout].set(b.astype(jnp.float32).reshape(1, dout))
        padded_params.append((w_p, b_p))
        prev_width = dout_pad
    out_pad = padded_params[-1][0].shape[1]
    feat_pad = _round_up(feat_dim, _LANE)

    # ---- VMEM budget & batch tile -------------------------------------------
    cd_item = jnp.dtype(compute_dtype).itemsize
    x_item = jnp.dtype(x.dtype).itemsize
    o_item = jnp.dtype(out_dtype).itemsize
    # Weights/biases are single-buffered (Buffered(1), constant index_map).
    weight_bytes = sum(w_p.size * cd_item + b_p.size * 4
                       for w_p, b_p in padded_params)
    max_width = max([input_dim] + [w_p.shape[1] for w_p, _ in padded_params])

    def _vmem_needed(tb):
        io = 2 * tb * input_dim * x_item + 2 * tb * (out_pad + feat_pad) * o_item
        live = 2 * tb * max_width * 4     # f32 acc + carried activation
        return weight_bytes + io + live

    try:
        vmem_cap = int(pltpu.get_tpu_info().vmem_capacity_bytes)
    except Exception:
        vmem_cap = 64 << 20               # v7x-safe fallback
    budget = int(vmem_cap * 0.85)

    tile_b = min(batch_tile, _round_up(B, _SUBLANE))
    # >= 2 grid steps when the batch allows it (v7x shards the "parallel"
    # axis across its 2 TensorCores; a grid of 1 idles one core).
    if B > 2 * _SUBLANE:
        tile_b = min(tile_b, _round_up(pl.cdiv(B, 2), _SUBLANE))
    align = _LANE if tile_b >= _LANE else _SUBLANE
    tile_b = _round_up(max(tile_b, _SUBLANE), align)
    # Shrink the batch tile before giving up on residency.
    while _vmem_needed(tile_b) > budget and tile_b > _SUBLANE:
        tile_b = max(_SUBLANE, _round_up(tile_b // 2, _SUBLANE))
    if _vmem_needed(tile_b) > budget:
        # TODO(synk): streamed-weight fallback (pltpu.emit_pipeline over dout
        # tiles per layer, activation resident) for hidden dims whose padded
        # weights exceed VMEM.
        raise ValueError(
            f"MLP parameters ({weight_bytes/2**20:.1f} MiB padded) do not fit "
            f"in VMEM budget ({budget/2**20:.1f} MiB); use bf16 compute_dtype "
            f"or a streamed-weight kernel.")

    grid_steps = pl.cdiv(B, tile_b)
    vmem_limit = int(min(max(_vmem_needed(tile_b) * 1.25 + (2 << 20), 32 << 20),
                         vmem_cap))

    # ---- specs ---------------------------------------------------------------
    in_specs = [pl.BlockSpec((tile_b, input_dim), lambda i: (i, 0))]
    flat_params = []
    for w_p, b_p in padded_params:
        # Constant block for every batch step -> resident, single-buffered.
        in_specs.append(pl.BlockSpec(w_p.shape, lambda i: (0, 0),
                                     pipeline_mode=pl.Buffered(1)))
        in_specs.append(pl.BlockSpec(b_p.shape, lambda i: (0, 0),
                                     pipeline_mode=pl.Buffered(1)))
        flat_params.extend([w_p, b_p])

    out_specs = (
        pl.BlockSpec((tile_b, out_pad), lambda i: (i, 0)),
        pl.BlockSpec((tile_b, feat_pad), lambda i: (i, 0)),
    )
    out_shape = (
        jax.ShapeDtypeStruct((B, out_pad), out_dtype),
        jax.ShapeDtypeStruct((B, feat_pad), out_dtype),
    )
    # TODO(synk): if the Dout=1 output ever becomes write-bound at very large
    # B, store it transposed (B on the lane axis) or in bf16.

    flops = sum(2 * grid_steps * tile_b * w_p.shape[0] * w_p.shape[1]
                for w_p, _ in padded_params)
    bytes_accessed = (B * input_dim * x_item
                      + weight_bytes
                      + B * (out_pad + feat_pad) * o_item)

    kernel = functools.partial(
        _mlp_fused_kernel, n_layers=n_layers, compute_dtype=compute_dtype)

    out_p, feat_p = pl.pallas_call(
        kernel,
        grid=(grid_steps,),
        in_specs=in_specs,
        out_specs=out_specs,
        out_shape=out_shape,
        compiler_params=pltpu.CompilerParams(
            dimension_semantics=("parallel",),
            vmem_limit_bytes=vmem_limit),
        cost_estimate=pl.CostEstimate(
            flops=flops, transcendentals=0, bytes_accessed=bytes_accessed),
    )(x2, *flat_params)

    out = out_p[:, :output_dim]
    features = feat_p[:, :feat_dim]
    return out, features


# ----------------------------------------------------------------------------
# Parameter init (mirrors nn.Linear default U(-1/sqrt(fan_in), 1/sqrt(fan_in)))
# ----------------------------------------------------------------------------
def init_mlp_params(key, n_layers, input_dim, hidden_dim, output_dim=1,
                    dtype=jnp.float32):
    assert n_layers >= 1, "n_layers should at least be 1"
    params = []
    for i in range(n_layers):
        din = input_dim if i == 0 else hidden_dim
        dout = output_dim if i == n_layers - 1 else hidden_dim
        key, kw, kb = jax.random.split(key, 3)
        bound = 1.0 / math.sqrt(din)
        # stored already transposed: (din, dout)
        w = jax.random.uniform(kw, (din, dout), dtype, minval=-bound, maxval=bound)
        b = jax.random.uniform(kb, (dout,), dtype, minval=-bound, maxval=bound)
        params.append((w, b))
    return params


# ----------------------------------------------------------------------------
# Pure-JAX reference for correctness checks
# ----------------------------------------------------------------------------
def mlp_forward_ref(params, x, input_dim):
    out = x.reshape(x.shape[0], input_dim)
    for (w, b) in params[:-1]:
        out = jnp.maximum(out @ w + b, 0.0)
    features = out
    w_last, b_last = params[-1]
    out = out @ w_last + b_last
    return out, features


if __name__ == "__main__":
    n_layers = 3
    batch = 8
    input_dim = 32
    hidden_dim = 32
    output_dim = 1

    key = jax.random.PRNGKey(0)
    key_p, key_x, key_xl = jax.random.split(key, 3)
    params = init_mlp_params(key_p, n_layers, input_dim, hidden_dim, output_dim)

    # Input (B, 4, 8) — the forward pass view()s it to (B, input_dim=32).
    x = jax.random.normal(key_x, (batch, 4, 8), dtype=jnp.float32)

    out, features = mlp_forward(params, x, input_dim)
    out, features = jax.block_until_ready((out, features))
    out_ref, feat_ref = mlp_forward_ref(params, x, input_dim)
    assert out.shape == (batch, output_dim), out.shape
    assert features.shape == (batch, hidden_dim), features.shape
    assert jnp.allclose(out, out_ref, atol=1e-5, rtol=1e-5)
    assert jnp.allclose(features, feat_ref, atol=1e-5, rtol=1e-5)

    # Larger, non-aligned batch: exercises the cdiv grid (partial last block,
    # masked edge stores, >=2 parallel steps), still exact in f32.
    xl = jax.random.normal(key_xl, (1000, input_dim), dtype=jnp.float32)
    out_l, feat_l = mlp_forward(params, xl, input_dim, batch_tile=256)
    out_l, feat_l = jax.block_until_ready((out_l, feat_l))
    out_l_ref, feat_l_ref = mlp_forward_ref(params, xl, input_dim)
    assert out_l.shape == (1000, output_dim)
    assert jnp.allclose(out_l, out_l_ref, atol=1e-5, rtol=1e-5)
    assert jnp.allclose(feat_l, feat_l_ref, atol=1e-5, rtol=1e-5)

    # bf16 operands / f32 accumulation variant (v6e/v7x 256-wide MXU path).
    out_h, feat_h = mlp_forward(params, x, input_dim,
                                compute_dtype=jnp.bfloat16)
    out_h, feat_h = jax.block_until_ready((out_h, feat_h))
    assert jnp.allclose(out_h.astype(jnp.float32), out_ref, atol=5e-2, rtol=5e-2)

    # n_layers == 1 edge case: features must equal the reshaped input exactly,
    # even with bf16 compute (features path bypasses the compute-dtype cast).
    params1 = init_mlp_params(jax.random.PRNGKey(7), 1, input_dim, hidden_dim,
                              output_dim)
    out1, feat1 = mlp_forward(params1, x, input_dim,
                              compute_dtype=jnp.bfloat16)
    out1, feat1 = jax.block_until_ready((out1, feat1))
    out1_ref, feat1_ref = mlp_forward_ref(params1, x, input_dim)
    assert feat1.shape == (batch, input_dim)
    assert jnp.allclose(feat1, feat1_ref, atol=0.0, rtol=0.0)
    assert jnp.allclose(out1.astype(jnp.float32), out1_ref, atol=5e-2, rtol=5e-2)

    print("KERNEL_OK")
</pallas_src>

<mosaic_0001>
module attributes {stable_mosaic.version = 11 : i64} {
  func.func @_mlp_fused_kernel(%arg0: i32, %arg1: memref<8x32xf32, #tpu.memory_space<vmem>>, %arg2: memref<32x128xf32, #tpu.memory_space<vmem>>, %arg3: memref<1x128xf32, #tpu.memory_space<vmem>>, %arg4: memref<128x128xf32, #tpu.memory_space<vmem>>, %arg5: memref<1x128xf32, #tpu.memory_space<vmem>>, %arg6: memref<128x128xf32, #tpu.memory_space<vmem>>, %arg7: memref<1x128xf32, #tpu.memory_space<vmem>>, %arg8: memref<8x128xf32, #tpu.memory_space<vmem>>, %arg9: memref<8x128xf32, #tpu.memory_space<vmem>>) attributes {dimension_semantics = [#tpu.dimension_semantics<parallel>], iteration_bounds = array<i64: 1>, scalar_prefetch = 0 : i64, scratch_operands = 0 : i64, tpu.core_type = #tpu.core_type<tc>, window_params = [{transform_indices = @transform_0, window_bounds = array<i64: 8, 32>}, {pipeline_mode = #tpu.pipeline_mode<synchronous>, transform_indices = @transform_1, window_bounds = array<i64: 32, 128>}, {pipeline_mode = #tpu.pipeline_mode<synchronous>, transform_indices = @transform_2, window_bounds = array<i64: 1, 128>}, {pipeline_mode = #tpu.pipeline_mode<synchronous>, transform_indices = @transform_3, window_bounds = array<i64: 128, 128>}, {pipeline_mode = #tpu.pipeline_mode<synchronous>, transform_indices = @transform_4, window_bounds = array<i64: 1, 128>}, {pipeline_mode = #tpu.pipeline_mode<synchronous>, transform_indices = @transform_5, window_bounds = array<i64: 128, 128>}, {pipeline_mode = #tpu.pipeline_mode<synchronous>, transform_indices = @transform_6, window_bounds = array<i64: 1, 128>}, {transform_indices = @transform_7, window_bounds = array<i64: 8, 128>}, {transform_indices = @transform_8, window_bounds = array<i64: 8, 128>}]} {
    %c0 = arith.constant 0 : index
    %c0_0 = arith.constant 0 : index
    %0 = vector.load %arg1[%c0, %c0_0] : memref<8x32xf32, #tpu.memory_space<vmem>>, vector<8x32xf32>
    %c0_1 = arith.constant 0 : index
    %c0_2 = arith.constant 0 : index
    %1 = vector.load %arg2[%c0_1, %c0_2] : memref<32x128xf32, #tpu.memory_space<vmem>>, vector<32x128xf32>
    %c0_3 = arith.constant 0 : index
    %c0_4 = arith.constant 0 : index
    %2 = vector.load %arg3[%c0_3, %c0_4] : memref<1x128xf32, #tpu.memory_space<vmem>>, vector<1x128xf32>
    %cst = arith.constant dense<0.000000e+00> : vector<8x128xf32>
    %3 = tpu.matmul %0, %1, %cst {dimension_numbers = #tpu.dot_dimension_numbers<[1], [0], [0], [1], [0, 0, 1, 1], [], []>} : vector<8x32xf32>, vector<32x128xf32>, vector<8x128xf32> -> vector<8x128xf32>
    %4 = vector.broadcast %2 : vector<1x128xf32> to vector<8x128xf32>
    %5 = arith.addf %3, %4 : vector<8x128xf32>
    %cst_5 = arith.constant 0.000000e+00 : f32
    %6 = vector.broadcast %cst_5 : f32 to vector<8x128xf32>
    %7 = arith.maximumf %5, %6 : vector<8x128xf32>
    %c0_6 = arith.constant 0 : index
    %c0_7 = arith.constant 0 : index
    %8 = vector.load %arg4[%c0_6, %c0_7] : memref<128x128xf32, #tpu.memory_space<vmem>>, vector<128x128xf32>
    %c0_8 = arith.constant 0 : index
    %c0_9 = arith.constant 0 : index
    %9 = vector.load %arg5[%c0_8, %c0_9] : memref<1x128xf32, #tpu.memory_space<vmem>>, vector<1x128xf32>
    %cst_10 = arith.constant dense<0.000000e+00> : vector<8x128xf32>
    %10 = tpu.matmul %7, %8, %cst_10 {dimension_numbers = #tpu.dot_dimension_numbers<[1], [0], [0], [1], [0, 0, 1, 1], [], []>} : vector<8x128xf32>, vector<128x128xf32>, vector<8x128xf32> -> vector<8x128xf32>
    %11 = vector.broadcast %9 : vector<1x128xf32> to vector<8x128xf32>
    %12 = arith.addf %10, %11 : vector<8x128xf32>
    %cst_11 = arith.constant 0.000000e+00 : f32
    %13 = vector.broadcast %cst_11 : f32 to vector<8x128xf32>
    %14 = arith.maximumf %12, %13 : vector<8x128xf32>
    %c0_12 = arith.constant 0 : index
    %c0_13 = arith.constant 0 : index
    %15 = vector.load %arg9[%c0_12, %c0_13] : memref<8x128xf32, #tpu.memory_space<vmem>>, vector<8x128xf32>
    tpu.vector_store %arg9[%c0_12, %c0_13], %14 {strides = array<i32>} : memref<8x128xf32, #tpu.memory_space<vmem>>, vector<8x128xf32>,
    %c0_14 = arith.constant 0 : index
    %c0_15 = arith.constant 0 : index
    %16 = vector.load %arg6[%c0_14, %c0_15] : memref<128x128xf32, #tpu.memory_space<vmem>>, vector<128x128xf32>
    %c0_16 = arith.constant 0 : index
    %c0_17 = arith.constant 0 : index
    %17 = vector.load %arg7[%c0_16, %c0_17] : memref<1x128xf32, #tpu.memory_space<vmem>>, vector<1x128xf32>
    %cst_18 = arith.constant dense<0.000000e+00> : vector<8x128xf32>
    %18 = tpu.matmul %14, %16, %cst_18 {dimension_numbers = #tpu.dot_dimension_numbers<[1], [0], [0], [1], [0, 0, 1, 1], [], []>} : vector<8x128xf32>, vector<128x128xf32>, vector<8x128xf32> -> vector<8x128xf32>
    %19 = vector.broadcast %17 : vector<1x128xf32> to vector<8x128xf32>
    %20 = arith.addf %18, %19 : vector<8x128xf32>
    %c0_19 = arith.constant 0 : index
    %c0_20 = arith.constant 0 : index
    %21 = vector.load %arg8[%c0_19, %c0_20] : memref<8x128xf32, #tpu.memory_space<vmem>>, vector<8x128xf32>
    tpu.vector_store %arg8[%c0_19, %c0_20], %20 {strides = array<i32>} : memref<8x128xf32, #tpu.memory_space<vmem>>, vector<8x128xf32>,
    return
  }
  func.func @transform_0(%arg0: i32) -> (i32, i32) {
    %c0_i32 = arith.constant 0 : i32
    %c0_i32_0 = arith.constant 0 : i32
    return %arg0, %c0_i32 : i32, i32
  }
  func.func @transform_1(%arg0: i32) -> (i32, i32) {
    %c0_i32 = arith.constant 0 : i32
    %c0_i32_0 = arith.constant 0 : i32
    %c0_i32_1 = arith.constant 0 : i32
    return %c0_i32, %c0_i32_0 : i32, i32
  }
  func.func @transform_2(%arg0: i32) -> (i32, i32) {
    %c0_i32 = arith.constant 0 : i32
    %c0_i32_0 = arith.constant 0 : i32
    %c0_i32_1 = arith.constant 0 : i32
    return %c0_i32, %c0_i32_0 : i32, i32
  }
  func.func @transform_3(%arg0: i32) -> (i32, i32) {
    %c0_i32 = arith.constant 0 : i32
    %c0_i32_0 = arith.constant 0 : i32
    %c0_i32_1 = arith.constant 0 : i32
    return %c0_i32, %c0_i32_0 : i32, i32
  }
  func.func @transform_4(%arg0: i32) -> (i32, i32) {
    %c0_i32 = arith.constant 0 : i32
    %c0_i32_0 = arith.constant 0 : i32
    %c0_i32_1 = arith.constant 0 : i32
    return %c0_i32, %c0_i32_0 : i32, i32
  }
  func.func @transform_5(%arg0: i32) -> (i32, i32) {
    %c0_i32 = arith.constant 0 : i32
    %c0_i32_0 = arith.constant 0 : i32
    %c0_i32_1 = arith.constant 0 : i32
    return %c0_i32, %c0_i32_0 : i32, i32
  }
  func.func @transform_6(%arg0: i32) -> (i32, i32) {
    %c0_i32 = arith.constant 0 : i32
    %c0_i32_0 = arith.constant 0 : i32
    %c0_i32_1 = arith.constant 0 : i32
    return %c0_i32, %c0_i32_0 : i32, i32
  }
  func.func @transform_7(%arg0: i32) -> (i32, i32) {
    %c0_i32 = arith.constant 0 : i32
    %c0_i32_0 = arith.constant 0 : i32
    return %arg0, %c0_i32 : i32, i32
  }
  func.func @transform_8(%arg0: i32) -> (i32, i32) {
    %c0_i32 = arith.constant 0 : i32
    %c0_i32_0 = arith.constant 0 : i32
    return %arg0, %c0_i32 : i32, i32
  }
}

</mosaic_0001>

<llo_original>
// kernel: tpu_custom_call.1
$region0: #{tpu_custom_call.1}
  #allocation0 [shape = 'u32[]', space=smem, size = 0x4, offset = 0x4, fixed_abs, tag = 'smem constant byte address 0x4 - core index']
  #allocation1 [shape = 'u32[144,128]{1,0:T(1,128)}', space=vmem, size = 0x12000, scoped, tag = 'internal scratch']
  %s0 = inlined_call_operand.hbm [shape: f32[8,32], index: 0, kind: input, shape index: {}]
  %s1 = inlined_call_operand.hbm [shape: f32[32,128], index: 1, kind: input, shape index: {}]
  %s2 = inlined_call_operand.vmem [shape: f32[1,128], index: 2, kind: input, shape index: {}]
  %s3 = inlined_call_operand.hbm [shape: f32[128,128], index: 3, kind: input, shape index: {}]
  %s4 = inlined_call_operand.vmem [shape: f32[1,128], index: 4, kind: input, shape index: {}]
  %s5 = inlined_call_operand.hbm [shape: f32[128,128], index: 5, kind: input, shape index: {}]
  %s6 = inlined_call_operand.vmem [shape: f32[1,128], index: 6, kind: input, shape index: {}]
  %s7 = inlined_call_operand.hbm [shape: f32[8,128], index: 7, kind: output, shape index: {0}]
  %s8 = inlined_call_operand.hbm [shape: f32[8,128], index: 8, kind: output, shape index: {1}]
  %9 = xla_tuple %s7, %s8
  %s10 = sld [smem:[#allocation0]]
  $region62: #{tpu_custom_call.1} parent=0
    _
  %s12 = ssub.s32 1, %s10
  %s13 = scalar_select 0, %s12, %s10
  $region1: #{tpu_custom_call.1} parent=0
    #allocation2 [shape = 'u8[4096]{0}', space=vmem, size = 0x1000, scoped, tag = 'input window, operand 0, single buffered']
    #allocation3 [shape = 's32[1]{0}', space=sflag, size = 0x4, scoped, tag = 'scoped memory for tpu_custom_call.1']
    #allocation4 [shape = 's32[1]{0}', space=sflag, size = 0x4, scoped, tag = 'scoped memory for tpu_custom_call.1']
    #allocation5 [shape = 'u8[16384]{0}', space=vmem, size = 0x4000, scoped, tag = 'input window, operand 1, single buffered']
    #allocation6 [shape = 's32[1]{0}', space=sflag, size = 0x4, scoped, tag = 'scoped memory for tpu_custom_call.1']
    #allocation7 [shape = 'u8[65536]{0}', space=vmem, size = 0x10000, scoped, tag = 'input window, operand 3, single buffered']
    #allocation8 [shape = 'u8[65536]{0}', space=vmem, size = 0x10000, scoped, tag = 'input window, operand 5, single buffered']
    #allocation9 [shape = 's32[1]{0}', space=sflag, size = 0x4, scoped, tag = 'scoped memory for tpu_custom_call.1']
    #allocation10 [shape = 'u8[4096]{0}', space=vmem, size = 0x1000, scoped, tag = 'output window, operand 0, single buffered']
    #allocation11 [shape = 'u8[4096]{0}', space=vmem, size = 0x1000, scoped, tag = 'output window, operand 1, single buffered']
    #allocation12 [shape = 's32[1]{0}', space=sflag, size = 0x4, scoped, tag = 'scoped memory for tpu_custom_call.1']
    %14 = vsyncpa [#allocation3], 0
    %15 = vsyncpa [#allocation6], 0
    %16 = vsyncpa [#allocation9], 0
    %17 = vsyncpa [#allocation4], 0
    %18 = vsyncpa [#allocation12], 0
    // Predicated region
    $region2: #{tpu_custom_call.1} parent=1 // pred_check
      _
    $region3: #{tpu_custom_call.1} parent=1 // pred_check_branch
      %20 = sbr.rel (0) target = $region5
    $region4: #{tpu_custom_call.1} parent=1 // pred_region
      %s22 = ssub.s32 128, 128
      %23 = vsyncadd [#allocation3], %s22
      %s25 = sshll.u32 [#allocation2], 4
      %s26 = int_to_ptr.vmem [resolvable:$true] %s25
      %28 = dma.hbm_to_vmem [thread:$0]  %s0, 128, %s26, [#allocation3]
    $region5: #{tpu_custom_call.1} parent=1 // pred_fallthru
      _
    // Predicated region
    $region6: #{tpu_custom_call.1} parent=1 // pred_check
      _
    $region7: #{tpu_custom_call.1} parent=1 // pred_check_branch
      %30 = sbr.rel (0) target = $region9
    $region8: #{tpu_custom_call.1} parent=1 // pred_region
      %s32 = ssub.s32 512, 512
      %33 = vsyncadd [#allocation6], %s32
      %s34 = sshll.u32 [#allocation5], 4
      %s35 = int_to_ptr.vmem [resolvable:$true] %s34
      %40 = dma.hbm_to_vmem [thread:$0]  %s1, 512, %s35, [#allocation6], 128, 128, 8
    $region9: #{tpu_custom_call.1} parent=1 // pred_fallthru
      _
    // Predicated region
    $region10: #{tpu_custom_call.1} parent=1 // pred_check
      _
    $region11: #{tpu_custom_call.1} parent=1 // pred_check_branch
      %42 = sbr.rel (0) target = $region13
    $region12: #{tpu_custom_call.1} parent=1 // pred_region
      _
    $region13: #{tpu_custom_call.1} parent=1 // pred_fallthru
      _
    // Predicated region
    $region14: #{tpu_custom_call.1} parent=1 // pred_check
      _
    $region15: #{tpu_custom_call.1} parent=1 // pred_check_branch
      %44 = sbr.rel (0) target = $region17
    $region16: #{tpu_custom_call.1} parent=1 // pred_region
      %s46 = ssub.s32 2048, 2048
      %47 = vsyncadd [#allocation6], %s46
      %s48 = sshll.u32 [#allocation7], 4
      %s49 = int_to_ptr.vmem [resolvable:$true] %s48
      %54 = dma.hbm_to_vmem [thread:$0]  %s3, 2048, %s49, [#allocation6], 128, 128, 8
    $region17: #{tpu_custom_call.1} parent=1 // pred_fallthru
      _
    // Predicated region
    $region18: #{tpu_custom_call.1} parent=1 // pred_check
      _
    $region19: #{tpu_custom_call.1} parent=1 // pred_check_branch
      %56 = sbr.rel (0) target = $region21
    $region20: #{tpu_custom_call.1} parent=1 // pred_region
      _
    $region21: #{tpu_custom_call.1} parent=1 // pred_fallthru
      _
    // Predicated region
    $region22: #{tpu_custom_call.1} parent=1 // pred_check
      _
    $region23: #{tpu_custom_call.1} parent=1 // pred_check_branch
      %58 = sbr.rel (0) target = $region25
    $region24: #{tpu_custom_call.1} parent=1 // pred_region
      %s60 = ssub.s32 2048, 2048
      %61 = vsyncadd [#allocation9], %s60
      %s62 = sshll.u32 [#allocation8], 4
      %s63 = int_to_ptr.vmem [resolvable:$true] %s62
      %68 = dma.hbm_to_vmem [thread:$0]  %s5, 2048, %s63, [#allocation9], 128, 128, 8
    $region25: #{tpu_custom_call.1} parent=1 // pred_fallthru
      _
    // Predicated region
    $region26: #{tpu_custom_call.1} parent=1 // pred_check
      _
    $region27: #{tpu_custom_call.1} parent=1 // pred_check_branch
      %70 = sbr.rel (0) target = $region29
    $region28: #{tpu_custom_call.1} parent=1 // pred_region
      _
    $region29: #{tpu_custom_call.1} parent=1 // pred_fallthru
      _
    // Predicated region
    $region30: #{tpu_custom_call.1} parent=1 // pred_check
      _
    $region31: #{tpu_custom_call.1} parent=1 // pred_check_branch
      %72 = sbr.rel (0) target = $region33
    $region32: #{tpu_custom_call.1} parent=1 // pred_region
      %73 = dma.done [#allocation3], 128
    $region33: #{tpu_custom_call.1} parent=1 // pred_fallthru
      _
    // Predicated region
    $region34: #{tpu_custom_call.1} parent=1 // pred_check
      _
    $region35: #{tpu_custom_call.1} parent=1 // pred_check_branch
      %75 = sbr.rel (0) target = $region37
    $region36: #{tpu_custom_call.1} parent=1 // pred_region
      %76 = dma.done [#allocation6], 512
    $region37: #{tpu_custom_call.1} parent=1 // pred_fallthru
      _
    // Predicated region
    $region38: #{tpu_custom_call.1} parent=1 // pred_check
      _
    $region39: #{tpu_custom_call.1} parent=1 // pred_check_branch
      %78 = sbr.rel (0) target = $region41
    $region40: #{tpu_custom_call.1} parent=1 // pred_region
      %79 = dma.done [#allocation6], 2048
    $region41: #{tpu_custom_call.1} parent=1 // pred_fallthru
      _
    // Predicated region
    $region42: #{tpu_custom_call.1} parent=1 // pred_check
      _
    $region43: #{tpu_custom_call.1} parent=1 // pred_check_branch
      %81 = sbr.rel (0) target = $region45
    $region44: #{tpu_custom_call.1} parent=1 // pred_region
      %82 = dma.done [#allocation9], 2048
    $region45: #{tpu_custom_call.1} parent=1 // pred_fallthru
      _
    %v83 = vld [vmem:[#allocation2] sm:$0xff]
    %v84 = vld [vmem:[#allocation5] sm:$0xff]
    %v85 = vld [vmem:[#allocation5 + $0x8] sm:$0xff]
    %v86 = vld [vmem:[#allocation5 + $0x10] sm:$0xff]
    %v87 = vld [vmem:[#allocation5 + $0x18] sm:$0xff]
    %v88 = vld [vmem:[%s2] sm:$0x1]
    %v90 = vlaneseq
    %v91 = vshrl.u32 %v90, 7
    %v92 = vsub.s32 0, %v91
    %v93 = vrot.slane %v88, %v92
    %vm95 = vcmask 261120
    %v97 = vsel %vm95, %v83, 0
    %99 = vmatprep.subr.mxu0 0.0
    %100 = vmatpush1.msra.mxu0 %v84
    %101 = vmatprep.subr.mxu0 0.0
    %102 = vmatpush1.msra.mxu0 %v85
    %103 = vmatprep.subr.mxu0 0.0
    %104 = vmatpush1.msra.mxu0 %v86
    %105 = vmatprep.subr.mxu0 0.0
    %106 = vmatpush1.msra.mxu0 %v87
    %107 = vmatprep.subr.mxu0 0.0
    %108 = vmatpush1.msra.mxu0 0.0
    %109 = vmatprep.subr.mxu0 0.0
    %110 = vmatpush1.msra.mxu0 0.0
    %111 = vmatprep.subr.mxu0 0.0
    %112 = vmatpush1.msra.mxu0 0.0
    %113 = vmatprep.subr.mxu0 0.0
    %114 = vmatpush1.msra.mxu0 0.0
    %115 = vmatprep.subr.mxu0 0.0
    %116 = vmatpush1.msra.mxu0 0.0
    %117 = vmatprep.subr.mxu0 0.0
    %118 = vmatpush1.msra.mxu0 0.0
    %119 = vmatprep.subr.mxu0 0.0
    %120 = vmatpush1.msra.mxu0 0.0
    %121 = vmatprep.subr.mxu0 0.0
    %122 = vmatpush1.msra.mxu0 0.0
    %123 = vmatprep.subr.mxu0 0.0
    %124 = vmatpush1.msra.mxu0 0.0
    %125 = vmatprep.subr.mxu0 0.0
    %126 = vmatpush1.msra.mxu0 0.0
    %127 = vmatprep.subr.mxu0 0.0
    %128 = vmatpush1.msra.mxu0 0.0
    %129 = vmatprep.subr.mxu0 0.0
    %130 = vmatpush1.msra.mxu0 0.0
    %131 = vmatprep.subr.mxu0 0.0
    %132 = vmatpush1.msra.mxu0 0.0
    %133 = vmatprep.subr.mxu0 0.0
    %134 = vmatpush1.msra.mxu0 0.0
    %135 = vmatprep.subr.mxu0 0.0
    %136 = vmatpush1.msra.mxu0 0.0
    %137 = vmatprep.subr.mxu0 0.0
    %138 = vmatpush1.msra.mxu0 0.0
    %139 = vmatprep.subr.mxu0 0.0
    %140 = vmatpush1.msra.mxu0 0.0
    %141 = vmatprep.subr.mxu0 0.0
    %142 = vmatpush1.msra.mxu0 0.0
    %143 = vmatprep.subr.mxu0 0.0
    %144 = vmatpush1.msra.mxu0 0.0
    %145 = vmatprep.subr.mxu0 0.0
    %146 = vmatpush1.msra.mxu0 0.0
    %147 = vmatprep.subr.mxu0 0.0
    %148 = vmatpush1.msra.mxu0 0.0
    %149 = vmatprep.subr.mxu0 0.0
    %150 = vmatpush1.msra.mxu0 0.0
    %151 = vmatprep.subr.mxu0 0.0
    %152 = vmatpush1.msra.mxu0 0.0
    %153 = vmatprep.subr.mxu0 0.0
    %154 = vmatpush1.msra.mxu0 0.0
    %155 = vmatprep.subr.mxu0 0.0
    %156 = vmatpush1.msra.mxu0 0.0
    %157 = vmatprep.subr.mxu0 0.0
    %158 = vmatpush1.msra.mxu0 0.0
    %159 = vmatprep.subr.mxu0 0.0
    %160 = vmatpush1.msra.mxu0 0.0
    %161 = vmatprep.subr.mxu0 0.0
    %162 = vmatpush1.msra.mxu0 0.0
    %163 = vmatprep.mubr.f32.mxu0 0.0
    %164 = vmatmul.mubr.f32.gmra.mrb[0].mxu0 %v97
    %v165 = vpop.f32.mrb[0].mxu0
    %v166 = vadd.f32 %v93, %v165
    %v167 = vpop.f32.mrb[0].mxu0
    %168 = vdwg.mxu0
    %v169 = vmax.f32 %v166, 0.0
    %v170 = vld [vmem:[#allocation7] sm:$0xff]
    %v171 = vld [vmem:[#allocation7 + $0x8] sm:$0xff]
    %v172 = vld [vmem:[#allocation7 + $0x10] sm:$0xff]
    %v173 = vld [vmem:[#allocation7 + $0x18] sm:$0xff]
    %v174 = vld [vmem:[#allocation7 + $0x20] sm:$0xff]
    %v175 = vld [vmem:[#allocation7 + $0x28] sm:$0xff]
    %v176 = vld [vmem:[#allocation7 + $0x30] sm:$0xff]
    %v177 = vld [vmem:[#allocation7 + $0x38] sm:$0xff]
    %v178 = vld [vmem:[#allocation7 + $0x40] sm:$0xff]
    %v179 = vld [vmem:[#allocation7 + $0x48] sm:$0xff]
    %v180 = vld [vmem:[#allocation7 + $0x50] sm:$0xff]
    %v181 = vld [vmem:[#allocation7 + $0x58] sm:$0xff]
    %v182 = vld [vmem:[#allocation7 + $0x60] sm:$0xff]
    %v183 = vld [vmem:[#allocation7 + $0x68] sm:$0xff]
    %v184 = vld [vmem:[#allocation7 + $0x70] sm:$0xff]
    %v185 = vld [vmem:[#allocation7 + $0x78] sm:$0xff]
    %v186 = vld [vmem:[%s4] sm:$0x1]
    %v188 = vlaneseq
    %v189 = vshrl.u32 %v188, 7
    %v190 = vsub.s32 0, %v189
    %v191 = vrot.slane %v186, %v190
    %193 = vmatprep.subr.mxu0 0.0
    %194 = vmatpush1.msra.mxu0 %v170
    %195 = vmatprep.subr.mxu0 0.0
    %196 = vmatpush1.msra.mxu0 %v171
    %197 = vmatprep.subr.mxu0 0.0
    %198 = vmatpush1.msra.mxu0 %v172
    %199 = vmatprep.subr.mxu0 0.0
    %200 = vmatpush1.msra.mxu0 %v173
    %201 = vmatprep.subr.mxu0 0.0
    %202 = vmatpush1.msra.mxu0 %v174
    %203 = vmatprep.subr.mxu0 0.0
    %204 = vmatpush1.msra.mxu0 %v175
    %205 = vmatprep.subr.mxu0 0.0
    %206 = vmatpush1.msra.mxu0 %v176
    %207 = vmatprep.subr.mxu0 0.0
    %208 = vmatpush1.msra.mxu0 %v177
    %209 = vmatprep.subr.mxu0 0.0
    %210 = vmatpush1.msra.mxu0 %v178
    %211 = vmatprep.subr.mxu0 0.0
    %212 = vmatpush1.msra.mxu0 %v179
    %213 = vmatprep.subr.mxu0 0.0
    %214 = vmatpush1.msra.mxu0 %v180
    %215 = vmatprep.subr.mxu0 0.0
    %216 = vmatpush1.msra.mxu0 %v181
    %217 = vmatprep.subr.mxu0 0.0
    %218 = vmatpush1.msra.mxu0 %v182
    %219 = vmatprep.subr.mxu0 0.0
    %220 = vmatpush1.msra.mxu0 %v183
    %221 = vmatprep.subr.mxu0 0.0
    %222 = vmatpush1.msra.mxu0 %v184
    %223 = vmatprep.subr.mxu0 0.0
    %224 = vmatpush1.msra.mxu0 %v185
    %225 = vmatprep.subr.mxu0 0.0
    %226 = vmatpush1.msra.mxu0 0.0
    %227 = vmatprep.subr.mxu0 0.0
    %228 = vmatpush1.msra.mxu0 0.0
    %229 = vmatprep.subr.mxu0 0.0
    %230 = vmatpush1.msra.mxu0 0.0
    %231 = vmatprep.subr.mxu0 0.0
    %232 = vmatpush1.msra.mxu0 0.0
    %233 = vmatprep.subr.mxu0 0.0
    %234 = vmatpush1.msra.mxu0 0.0
    %235 = vmatprep.subr.mxu0 0.0
    %236 = vmatpush1.msra.mxu0 0.0
    %237 = vmatprep.subr.mxu0 0.0
    %238 = vmatpush1.msra.mxu0 0.0
    %239 = vmatprep.subr.mxu0 0.0
    %240 = vmatpush1.msra.mxu0 0.0
    %241 = vmatprep.subr.mxu0 0.0
    %242 = vmatpush1.msra.mxu0 0.0
    %243 = vmatprep.subr.mxu0 0.0
    %244 = vmatpush1.msra.mxu0 0.0
    %245 = vmatprep.subr.mxu0 0.0
    %246 = vmatpush1.msra.mxu0 0.0
    %247 = vmatprep.subr.mxu0 0.0
    %248 = vmatpush1.msra.mxu0 0.0
    %249 = vmatprep.subr.mxu0 0.0
    %250 = vmatpush1.msra.mxu0 0.0
    %251 = vmatprep.subr.mxu0 0.0
    %252 = vmatpush1.msra.mxu0 0.0
    %253 = vmatprep.subr.mxu0 0.0
    %254 = vmatpush1.msra.mxu0 0.0
    %255 = vmatprep.subr.mxu0 0.0
    %256 = vmatpush1.msra.mxu0 0.0
    %257 = vmatprep.mubr.f32.mxu0 0.0
    %258 = vmatmul.mubr.f32.gmra.mrb[0].mxu0 %v169
    %v259 = vpop.f32.mrb[0].mxu0
    %v260 = vadd.f32 %v191, %v259
    %v261 = vpop.f32.mrb[0].mxu0
    %262 = vdwg.mxu0
    %v263 = vmax.f32 %v260, 0.0
    %264 = vst [vmem:[#allocation11] sm:$0xff] %v263
    %v265 = vld [vmem:[#allocation8] sm:$0xff]
    %v266 = vld [vmem:[#allocation8 + $0x8] sm:$0xff]
    %v267 = vld [vmem:[#allocation8 + $0x10] sm:$0xff]
    %v268 = vld [vmem:[#allocation8 + $0x18] sm:$0xff]
    %v269 = vld [vmem:[#allocation8 + $0x20] sm:$0xff]
    %v270 = vld [vmem:[#allocation8 + $0x28] sm:$0xff]
    %v271 = vld [vmem:[#allocation8 + $0x30] sm:$0xff]
    %v272 = vld [vmem:[#allocation8 + $0x38] sm:$0xff]
    %v273 = vld [vmem:[#allocation8 + $0x40] sm:$0xff]
    %v274 = vld [vmem:[#allocation8 + $0x48] sm:$0xff]
    %v275 = vld [vmem:[#allocation8 + $0x50] sm:$0xff]
    %v276 = vld [vmem:[#allocation8 + $0x58] sm:$0xff]
    %v277 = vld [vmem:[#allocation8 + $0x60] sm:$0xff]
    %v278 = vld [vmem:[#allocation8 + $0x68] sm:$0xff]
    %v279 = vld [vmem:[#allocation8 + $0x70] sm:$0xff]
    %v280 = vld [vmem:[#allocation8 + $0x78] sm:$0xff]
    %v281 = vld [vmem:[%s6] sm:$0x1]
    %v283 = vlaneseq
    %v284 = vshrl.u32 %v283, 7
    %v285 = vsub.s32 0, %v284
    %v286 = vrot.slane %v281, %v285
    %288 = vmatprep.subr.mxu0 0.0
    %289 = vmatpush1.msra.mxu0 %v265
    %290 = vmatprep.subr.mxu0 0.0
    %291 = vmatpush1.msra.mxu0 %v266
    %292 = vmatprep.subr.mxu0 0.0
    %293 = vmatpush1.msra.mxu0 %v267
    %294 = vmatprep.subr.mxu0 0.0
    %295 = vmatpush1.msra.mxu0 %v268
    %296 = vmatprep.subr.mxu0 0.0
    %297 = vmatpush1.msra.mxu0 %v269
    %298 = vmatprep.subr.mxu0 0.0
    %299 = vmatpush1.msra.mxu0 %v270
    %300 = vmatprep.subr.mxu0 0.0
    %301 = vmatpush1.msra.mxu0 %v271
    %302 = vmatprep.subr.mxu0 0.0
    %303 = vmatpush1.msra.mxu0 %v272
    %304 = vmatprep.subr.mxu0 0.0
    %305 = vmatpush1.msra.mxu0 %v273
    %306 = vmatprep.subr.mxu0 0.0
    %307 = vmatpush1.msra.mxu0 %v274
    %308 = vmatprep.subr.mxu0 0.0
    %309 = vmatpush1.msra.mxu0 %v275
    %310 = vmatprep.subr.mxu0 0.0
    %311 = vmatpush1.msra.mxu0 %v276
    %312 = vmatprep.subr.mxu0 0.0
    %313 = vmatpush1.msra.mxu0 %v277
    %314 = vmatprep.subr.mxu0 0.0
    %315 = vmatpush1.msra.mxu0 %v278
    %316 = vmatprep.subr.mxu0 0.0
    %317 = vmatpush1.msra.mxu0 %v279
    %318 = vmatprep.subr.mxu0 0.0
    %319 = vmatpush1.msra.mxu0 %v280
    %320 = vmatprep.subr.mxu0 0.0
    %321 = vmatpush1.msra.mxu0 0.0
    %322 = vmatprep.subr.mxu0 0.0
    %323 = vmatpush1.msra.mxu0 0.0
    %324 = vmatprep.subr.mxu0 0.0
    %325 = vmatpush1.msra.mxu0 0.0
    %326 = vmatprep.subr.mxu0 0.0
    %327 = vmatpush1.msra.mxu0 0.0
    %328 = vmatprep.subr.mxu0 0.0
    %329 = vmatpush1.msra.mxu0 0.0
    %330 = vmatprep.subr.mxu0 0.0
    %331 = vmatpush1.msra.mxu0 0.0
    %332 = vmatprep.subr.mxu0 0.0
    %333 = vmatpush1.msra.mxu0 0.0
    %334 = vmatprep.subr.mxu0 0.0
    %335 = vmatpush1.msra.mxu0 0.0
    %336 = vmatprep.subr.mxu0 0.0
    %337 = vmatpush1.msra.mxu0 0.0
    %338 = vmatprep.subr.mxu0 0.0
    %339 = vmatpush1.msra.mxu0 0.0
    %340 = vmatprep.subr.mxu0 0.0
    %341 = vmatpush1.msra.mxu0 0.0
    %342 = vmatprep.subr.mxu0 0.0
    %343 = vmatpush1.msra.mxu0 0.0
    %344 = vmatprep.subr.mxu0 0.0
    %345 = vmatpush1.msra.mxu0 0.0
    %346 = vmatprep.subr.mxu0 0.0
    %347 = vmatpush1.msra.mxu0 0.0
    %348 = vmatprep.subr.mxu0 0.0
    %349 = vmatpush1.msra.mxu0 0.0
    %350 = vmatprep.subr.mxu0 0.0
    %351 = vmatpush1.msra.mxu0 0.0
    %352 = vmatprep.mubr.f32.mxu0 0.0
    %353 = vmatmul.mubr.f32.gmra.mrb[0].mxu0 %v263
    %v354 = vpop.f32.mrb[0].mxu0
    %v355 = vadd.f32 %v286, %v354
    %v356 = vpop.f32.mrb[0].mxu0
    %357 = vdwg.mxu0
    %358 = vst [vmem:[#allocation10] sm:$0xff] %v355
    // Predicated region
    $region46: #{tpu_custom_call.1} parent=1 // pred_check
      _
    $region47: #{tpu_custom_call.1} parent=1 // pred_check_branch
      %360 = sbr.rel (0) target = $region49
    $region48: #{tpu_custom_call.1} parent=1 // pred_region
      %s362 = ssub.s32 128, 128
      %363 = vsyncadd [#allocation4], %s362
      %s365 = sshll.u32 [#allocation10], 4
      %s366 = int_to_ptr.vmem [resolvable:$true] %s365
      %368 = dma.vmem_to_hbm [thread:$0]  %s366, 128, %s7, [#allocation4]
    $region49: #{tpu_custom_call.1} parent=1 // pred_fallthru
      _
    // Predicated region
    $region50: #{tpu_custom_call.1} parent=1 // pred_check
      _
    $region51: #{tpu_custom_call.1} parent=1 // pred_check_branch
      %370 = sbr.rel (0) target = $region53
    $region52: #{tpu_custom_call.1} parent=1 // pred_region
      %s372 = ssub.s32 128, 128
      %373 = vsyncadd [#allocation12], %s372
      %s375 = sshll.u32 [#allocation11], 4
      %s376 = int_to_ptr.vmem [resolvable:$true] %s375
      %378 = dma.vmem_to_hbm [thread:$0]  %s376, 128, %s8, [#allocation12]
    $region53: #{tpu_custom_call.1} parent=1 // pred_fallthru
      _
    // Predicated region
    $region54: #{tpu_custom_call.1} parent=1 // pred_check
      _
    $region55: #{tpu_custom_call.1} parent=1 // pred_check_branch
      %380 = sbr.rel (0) target = $region57
    $region56: #{tpu_custom_call.1} parent=1 // pred_region
      %381 = dma.done [#allocation4], 128
    $region57: #{tpu_custom_call.1} parent=1 // pred_fallthru
      _
    // Predicated region
    $region58: #{tpu_custom_call.1} parent=1 // pred_check
      _
    $region59: #{tpu_custom_call.1} parent=1 // pred_check_branch
      %383 = sbr.rel (0) target = $region61
    $region60: #{tpu_custom_call.1} parent=1 // pred_region
      %384 = dma.done [#allocation12], 128
    $region61: #{tpu_custom_call.1} parent=1 // pred_fallthru
      _
    %385 = vsyncpa [#allocation3], 1
    %386 = vsyncpa [#allocation6], 1
    %387 = vsyncpa [#allocation9], 1
    %388 = vsyncpa [#allocation4], 1
    %389 = vsyncpa [#allocation12], 1

</llo_original>
